<compile_context>
chip_gen: v6e
topology: v6e:2x2x1
jax: 0.10.0
libtpu: 0.0.40
codegen_flags: <defaults>
</compile_context>

<pallas_src>
import numpy as np
import jax
import jax.numpy as jnp
from jax import lax
from jax.experimental import pallas as pl
from jax.experimental.pallas import tpu as pltpu

LANE = 128


def _round_up(v, m):
    return ((v + m - 1) // m) * m


def _relgraphconv_kernel(
    tile_rel_ref, tile_nblk_ref,   # scalar prefetch (SMEM int32): per-tile rel / dst-block id
    xg_ref,                        # (TILE_E, in_pad)  bf16   pre-gathered x[src] for this tile
    w_ref,                         # (1, in_pad, out_pad) bf16  this tile's relation weight
    norm_ref,                      # (TILE_E, 1) f32    per-edge norm (0 for padded edges)
    dst_ref,                       # (1, TILE_E) int32  destination node ids
    bias_ref,                      # (1, out_pad) f32
    out_ref,                       # (TILE_N, out_pad) f32  accumulator, resident per dst tile
):
    t = pl.program_id(0)
    nblk = tile_nblk_ref[t]
    tile_n, out_pad = out_ref.shape
    tile_e = xg_ref.shape[0]

    # First edge tile touching this destination block?  (Tiles are sorted by dst
    # block, so the output buffer stays resident within a run; initialize it
    # with the bias here -- no finalize pass needed.)
    prev = tile_nblk_ref[jnp.maximum(t - 1, 0)]
    is_first = jnp.logical_or(t == 0, nblk != prev)

    @pl.when(is_first)
    def _init():
        out_ref[...] = jnp.broadcast_to(bias_ref[...], (tile_n, out_pad))

    # 1) Messages for this edge tile: bf16 MXU matmul, f32 accumulation,
    #    scaled by the per-edge norm column (padded edges have norm == 0).
    msg = (
        jnp.dot(xg_ref[...], w_ref[0], preferred_element_type=jnp.float32)
        * norm_ref[...]
    )                                                         # (TILE_E, out_pad) f32

    # 2) Scatter-add into the destination tile as a one-hot matmul on the MXU
    #    (replaces the serialized per-edge read-modify-write loop).
    dst_local = dst_ref[...] - nblk * tile_n                  # (1, TILE_E)
    row_ids = lax.broadcasted_iota(jnp.int32, (tile_n, tile_e), 0)
    scatter = (row_ids == dst_local).astype(jnp.float32)      # (TILE_N, TILE_E)
    out_ref[...] += jnp.dot(scatter, msg, preferred_element_type=jnp.float32)


def _bucket_edges(src, dst, etype, norm, num_rels, num_nodes, tile_e, tile_n):
    """Host-side preprocessing (edge structure must be concrete, not traced):
    sort edges by (dst tile, relation) and pad every (dst tile, relation) bucket
    to a whole number of TILE_E edge tiles.  Padded edges get norm = 0 (zero
    contribution) and dst = first node of the tile (always in-range).  Returns
    per-edge src/dst/norm plus per-tile relation ids and dst-block ids."""
    src = np.asarray(src, np.int32)
    dst = np.asarray(dst, np.int32)
    et = np.asarray(etype, np.int32)
    nrm = np.asarray(norm, np.float32)

    n_blocks = -(-num_nodes // tile_n)
    dblk = dst // tile_n
    order = np.lexsort((et, dblk))              # sort by dst block, then relation
    src, dst, et, nrm, dblk = src[order], dst[order], et[order], nrm[order], dblk[order]

    srcs, dsts, nrms, tile_rel, tile_blk = [], [], [], [], []
    for b in range(n_blocks):
        in_blk = dblk == b
        got_tile = False
        for r in range(num_rels):
            sel = in_blk & (et == r)
            cnt = int(sel.sum())
            if cnt == 0:
                continue
            pad = (-cnt) % tile_e
            srcs.append(np.concatenate([src[sel], np.zeros(pad, np.int32)]))
            dsts.append(np.concatenate([dst[sel], np.full(pad, b * tile_n, np.int32)]))
            nrms.append(np.concatenate([nrm[sel], np.zeros(pad, np.float32)]))
            ntile = (cnt + pad) // tile_e
            tile_rel.append(np.full(ntile, r, np.int32))
            tile_blk.append(np.full(ntile, b, np.int32))
            got_tile = True
        if not got_tile:
            # Dummy all-padding tile so this dst block still gets bias-initialized.
            srcs.append(np.zeros(tile_e, np.int32))
            dsts.append(np.full(tile_e, b * tile_n, np.int32))
            nrms.append(np.zeros(tile_e, np.float32))
            tile_rel.append(np.zeros(1, np.int32))
            tile_blk.append(np.full(1, b, np.int32))

    return (np.concatenate(srcs), np.concatenate(dsts), np.concatenate(nrms),
            np.concatenate(tile_rel), np.concatenate(tile_blk))


def rel_graph_conv(x, weight, bias, src, dst, etype, norm, *,
                   tile_e=256, tile_n=128, compute_dtype=jnp.bfloat16):
    """x: (N, in_feat); weight: (R, in_feat, out_feat); bias: (out_feat,);
    src/dst/etype: (E,) int32; norm: (E,) f32  ->  (N, out_feat)."""
    n_nodes, in_feat = x.shape
    num_rels, _, out_feat = weight.shape

    tile_n = min(tile_n, _round_up(n_nodes, 8))
    in_pad = _round_up(in_feat, LANE)
    out_pad = _round_up(out_feat, LANE)
    n_blocks = -(-n_nodes // tile_n)
    n_pad = n_blocks * tile_n

    # Host-side bucketing by (dst tile, relation); edge arrays must be concrete.
    src_s, dst_s, norm_s, tile_rel, tile_blk = _bucket_edges(
        src, dst, etype, norm, num_rels, n_nodes, tile_e, tile_n
    )
    n_tiles = int(tile_rel.shape[0])

    # Lane-dense feature padding; bf16 compute dtype with f32 accumulation in-kernel.
    xp = jnp.pad(x.astype(jnp.float32),
                 ((0, 0), (0, in_pad - in_feat))).astype(compute_dtype)
    wp = jnp.pad(weight.astype(jnp.float32),
                 ((0, 0), (0, in_pad - in_feat),
                  (0, out_pad - out_feat))).astype(compute_dtype)
    bp = jnp.pad(bias.astype(jnp.float32), (0, out_pad - out_feat)).reshape(1, out_pad)

    # Pre-gather source rows with XLA so the kernel streams pipelined DMA blocks.
    xg = xp[jnp.asarray(src_s, jnp.int32)]                       # (n_tiles*TILE_E, in_pad)
    norm_col = jnp.asarray(norm_s, jnp.float32).reshape(-1, 1)   # (n_tiles*TILE_E, 1)
    dst_row = jnp.asarray(dst_s, jnp.int32).reshape(1, -1)       # (1, n_tiles*TILE_E)
    tile_rel = jnp.asarray(tile_rel, jnp.int32)
    tile_blk = jnp.asarray(tile_blk, jnp.int32)

    grid_spec = pltpu.PrefetchScalarGridSpec(
        num_scalar_prefetch=2,                 # per-tile relation id, dst-block id
        grid=(n_tiles,),
        in_specs=[
            # Pre-gathered source features: streamed edge tiles.
            pl.BlockSpec((tile_e, in_pad), lambda t, tr, tb: (t, 0)),
            # W[rel(tile)]: selected per edge tile via scalar prefetch.
            pl.BlockSpec((1, in_pad, out_pad), lambda t, tr, tb: (tr[t], 0, 0)),
            # Per-edge norm column.
            pl.BlockSpec((tile_e, 1), lambda t, tr, tb: (t, 0)),
            # Per-edge destination ids (VMEM, used by the one-hot scatter).
            pl.BlockSpec((1, tile_e), lambda t, tr, tb: (0, t)),
            # Bias: resident.
            pl.BlockSpec((1, out_pad), lambda t, tr, tb: (0, 0)),
        ],
        # Output doubles as the accumulator for the current destination tile.
        out_specs=pl.BlockSpec((tile_n, out_pad), lambda t, tr, tb: (tb[t], 0)),
    )

    out = pl.pallas_call(
        _relgraphconv_kernel,
        out_shape=jax.ShapeDtypeStruct((n_pad, out_pad), jnp.float32),
        grid_spec=grid_spec,
        compiler_params=pltpu.CompilerParams(
            dimension_semantics=("arbitrary",),
            vmem_limit_bytes=64 * 1024 * 1024,
        ),
    )(tile_rel, tile_blk, xg, wp, norm_col, dst_row, bp)

    return out[:n_nodes, :out_feat].astype(x.dtype)


def ref_forward(x, weight, bias, src, dst, etype, norm):
    """Plain-JAX reference of RelGraphConv.forward (basis, num_bases==num_rels)."""
    msg = jnp.einsum("ei,eio->eo", x[src], weight[etype]) * norm[:, None]
    h = jnp.zeros((x.shape[0], weight.shape[2]), jnp.float32).at[dst].add(msg)
    return h + bias


if __name__ == "__main__":
    # Small, deterministic problem.
    N, in_feat, out_feat = 16, 32, 32
    num_rels, E = 4, 64

    key = jax.random.PRNGKey(0)
    k_x, k_w, k_src, k_dst, k_et, k_n = jax.random.split(key, 6)

    x = jax.random.normal(k_x, (N, in_feat), dtype=jnp.float32)

    # xavier_uniform_(gain=calculate_gain('relu')=sqrt(2)) on (num_rels, in, out):
    gain = jnp.sqrt(2.0)
    fan_in, fan_out = in_feat * out_feat, num_rels * out_feat
    bound = gain * jnp.sqrt(6.0 / (fan_in + fan_out))
    weight = jax.random.uniform(
        k_w, (num_rels, in_feat, out_feat), jnp.float32, -bound, bound
    )
    bias = jnp.zeros((out_feat,), jnp.float32)        # nn.init.zeros_(h_bias)

    src = jax.random.randint(k_src, (E,), 0, N, dtype=jnp.int32)
    dst = jax.random.randint(k_dst, (E,), 0, N, dtype=jnp.int32)
    etype = jax.random.randint(k_et, (E,), 0, num_rels, dtype=jnp.int32)
    norm = jax.random.uniform(k_n, (E,), jnp.float32, 0.1, 1.0)   # norm='n'

    out = rel_graph_conv(x, weight, bias, src, dst, etype, norm,
                         tile_e=128, tile_n=16)
    out = jax.block_until_ready(out)

    # Kernel computes bf16 x/W with f32 accumulation: compare tightly against a
    # reference on bf16-quantized inputs, loosely against the full-f32 reference.
    x_q = x.astype(jnp.bfloat16).astype(jnp.float32)
    w_q = weight.astype(jnp.bfloat16).astype(jnp.float32)
    ref_q = ref_forward(x_q, w_q, bias, src, dst, etype, norm)
    ref_f = ref_forward(x, weight, bias, src, dst, etype, norm)

    assert out.shape == (N, out_feat)
    assert jnp.allclose(out, ref_q, rtol=1e-3, atol=1e-3), (
        f"max abs err vs bf16-input ref = {jnp.max(jnp.abs(out - ref_q))}"
    )
    assert jnp.allclose(out, ref_f, rtol=5e-2, atol=5e-2), (
        f"max abs err vs f32 ref = {jnp.max(jnp.abs(out - ref_f))}"
    )
    print("KERNEL_OK")
</pallas_src>

<mosaic_0001>
module attributes {stable_mosaic.version = 11 : i64} {
  func.func @_relgraphconv_kernel(%arg0: i32, %arg1: memref<4xi32, #tpu.memory_space<smem>>, %arg2: memref<4xi32, #tpu.memory_space<smem>>, %arg3: memref<128x128xbf16, #tpu.memory_space<vmem>>, %arg4: memref<1x128x128xbf16, #tpu.memory_space<vmem>>, %arg5: memref<128x1xf32, #tpu.memory_space<vmem>>, %arg6: memref<1x128xi32, #tpu.memory_space<vmem>>, %arg7: memref<1x128xf32, #tpu.memory_space<vmem>>, %arg8: memref<16x128xf32, #tpu.memory_space<vmem>>) attributes {dimension_semantics = [#tpu.dimension_semantics<arbitrary>], iteration_bounds = array<i64: 4>, scalar_prefetch = 2 : i64, scratch_operands = 0 : i64, tpu.core_type = #tpu.core_type<tc>, window_params = [{transform_indices = @transform_0, window_bounds = array<i64: 128, 128>}, {transform_indices = @transform_1, window_bounds = array<i64: 1, 128, 128>}, {transform_indices = @transform_2, window_bounds = array<i64: 128, 1>}, {transform_indices = @transform_3, window_bounds = array<i64: 1, 128>}, {pipeline_mode = #tpu.pipeline_mode<synchronous>, transform_indices = @transform_4, window_bounds = array<i64: 1, 128>}, {transform_indices = @transform_5, window_bounds = array<i64: 16, 128>}]} {
    %0 = arith.index_cast %arg0 : i32 to index
    %1 = memref.load %arg2[%0] : memref<4xi32, #tpu.memory_space<smem>>
    %c1_i32 = arith.constant 1 : i32
    %2 = arith.subi %arg0, %c1_i32 : i32
    %c0_i32 = arith.constant 0 : i32
    %3 = arith.maxsi %2, %c0_i32 : i32
    %4 = arith.index_cast %3 : i32 to index
    %5 = memref.load %arg2[%4] : memref<4xi32, #tpu.memory_space<smem>>
    %c0_i32_0 = arith.constant 0 : i32
    %6 = arith.cmpi eq, %arg0, %c0_i32_0 : i32
    %7 = arith.cmpi ne, %1, %5 : i32
    %8 = arith.ori %6, %7 : i1
    %9 = arith.extui %8 : i1 to i32
    %c0_i32_1 = arith.constant 0 : i32
    %10 = arith.cmpi ne, %9, %c0_i32_1 : i32
    scf.if %10 {
      %c0_15 = arith.constant 0 : index
      %c0_16 = arith.constant 0 : index
      %31 = vector.load %arg7[%c0_15, %c0_16] : memref<1x128xf32, #tpu.memory_space<vmem>>, vector<1x128xf32>
      %32 = vector.shape_cast %31 : vector<1x128xf32> to vector<1x128xf32>
      %33 = vector.broadcast %32 : vector<1x128xf32> to vector<16x128xf32>
      %c0_17 = arith.constant 0 : index
      %c0_18 = arith.constant 0 : index
      %34 = vector.load %arg8[%c0_17, %c0_18] : memref<16x128xf32, #tpu.memory_space<vmem>>, vector<16x128xf32>
      tpu.vector_store %arg8[%c0_17, %c0_18], %33 {strides = array<i32>} : memref<16x128xf32, #tpu.memory_space<vmem>>, vector<16x128xf32>,
    } else {
    }
    %c0 = arith.constant 0 : index
    %c0_2 = arith.constant 0 : index
    %11 = vector.load %arg3[%c0, %c0_2] : memref<128x128xbf16, #tpu.memory_space<vmem>>, vector<128x128xbf16>
    %c0_3 = arith.constant 0 : index
    %c0_4 = arith.constant 0 : index
    %c0_5 = arith.constant 0 : index
    %12 = vector.load %arg4[%c0_3, %c0_4, %c0_5] : memref<1x128x128xbf16, #tpu.memory_space<vmem>>, vector<1x128x128xbf16>
    %13 = vector.shape_cast %12 : vector<1x128x128xbf16> to vector<128x128xbf16>
    %cst = arith.constant dense<0.000000e+00> : vector<128x128xf32>
    %14 = tpu.matmul %11, %13, %cst {dimension_numbers = #tpu.dot_dimension_numbers<[1], [0], [0], [1], [0, 0, 1, 1], [], []>} : vector<128x128xbf16>, vector<128x128xbf16>, vector<128x128xf32> -> vector<128x128xf32>
    %c0_6 = arith.constant 0 : index
    %c0_7 = arith.constant 0 : index
    %15 = vector.load %arg5[%c0_6, %c0_7] : memref<128x1xf32, #tpu.memory_space<vmem>>, vector<128x1xf32>
    %16 = vector.broadcast %15 : vector<128x1xf32> to vector<128x128xf32>
    %17 = arith.mulf %14, %16 : vector<128x128xf32>
    %c0_8 = arith.constant 0 : index
    %c0_9 = arith.constant 0 : index
    %18 = vector.load %arg6[%c0_8, %c0_9] : memref<1x128xi32, #tpu.memory_space<vmem>>, vector<1x128xi32>
    %c16_i32 = arith.constant 16 : i32
    %19 = arith.muli %1, %c16_i32 : i32
    %20 = vector.broadcast %19 : i32 to vector<1x128xi32>
    %21 = arith.subi %18, %20 : vector<1x128xi32>
    %22 = tpu.iota {dimensions = array<i32: 0>} : vector<16x128xi32>
    %23 = vector.broadcast %21 : vector<1x128xi32> to vector<16x128xi32>
    %24 = arith.cmpi eq, %22, %23 : vector<16x128xi32>
    %25 = arith.extui %24 : vector<16x128xi1> to vector<16x128xi32>
    %26 = arith.sitofp %25 : vector<16x128xi32> to vector<16x128xf32>
    %c0_10 = arith.constant 0 : index
    %c0_11 = arith.constant 0 : index
    %27 = vector.load %arg8[%c0_10, %c0_11] : memref<16x128xf32, #tpu.memory_space<vmem>>, vector<16x128xf32>
    %cst_12 = arith.constant dense<0.000000e+00> : vector<16x128xf32>
    %28 = tpu.matmul %26, %17, %cst_12 {dimension_numbers = #tpu.dot_dimension_numbers<[1], [0], [0], [1], [0, 0, 1, 1], [], []>} : vector<16x128xf32>, vector<128x128xf32>, vector<16x128xf32> -> vector<16x128xf32>
    %29 = arith.addf %27, %28 : vector<16x128xf32>
    %c0_13 = arith.constant 0 : index
    %c0_14 = arith.constant 0 : index
    %30 = vector.load %arg8[%c0_13, %c0_14] : memref<16x128xf32, #tpu.memory_space<vmem>>, vector<16x128xf32>
    tpu.vector_store %arg8[%c0_13, %c0_14], %29 {strides = array<i32>} : memref<16x128xf32, #tpu.memory_space<vmem>>, vector<16x128xf32>,
    return
  }
  func.func @transform_0(%arg0: i32, %arg1: memref<4xi32, #tpu.memory_space<smem>>, %arg2: memref<4xi32, #tpu.memory_space<smem>>) -> (i32, i32) {
    %c0_i32 = arith.constant 0 : i32
    %c0_i32_0 = arith.constant 0 : i32
    return %arg0, %c0_i32 : i32, i32
  }
  func.func @transform_1(%arg0: i32, %arg1: memref<4xi32, #tpu.memory_space<smem>>, %arg2: memref<4xi32, #tpu.memory_space<smem>>) -> (i32, i32, i32) {
    %0 = arith.index_cast %arg0 : i32 to index
    %1 = memref.load %arg1[%0] : memref<4xi32, #tpu.memory_space<smem>>
    %c0_i32 = arith.constant 0 : i32
    %c0_i32_0 = arith.constant 0 : i32
    %c0_i32_1 = arith.constant 0 : i32
    return %1, %c0_i32, %c0_i32_0 : i32, i32, i32
  }
  func.func @transform_2(%arg0: i32, %arg1: memref<4xi32, #tpu.memory_space<smem>>, %arg2: memref<4xi32, #tpu.memory_space<smem>>) -> (i32, i32) {
    %c0_i32 = arith.constant 0 : i32
    %c0_i32_0 = arith.constant 0 : i32
    return %arg0, %c0_i32 : i32, i32
  }
  func.func @transform_3(%arg0: i32, %arg1: memref<4xi32, #tpu.memory_space<smem>>, %arg2: memref<4xi32, #tpu.memory_space<smem>>) -> (i32, i32) {
    %c0_i32 = arith.constant 0 : i32
    %c0_i32_0 = arith.constant 0 : i32
    return %c0_i32, %arg0 : i32, i32
  }
  func.func @transform_4(%arg0: i32, %arg1: memref<4xi32, #tpu.memory_space<smem>>, %arg2: memref<4xi32, #tpu.memory_space<smem>>) -> (i32, i32) {
    %c0_i32 = arith.constant 0 : i32
    %c0_i32_0 = arith.constant 0 : i32
    %c0_i32_1 = arith.constant 0 : i32
    return %c0_i32, %c0_i32_0 : i32, i32
  }
  func.func @transform_5(%arg0: i32, %arg1: memref<4xi32, #tpu.memory_space<smem>>, %arg2: memref<4xi32, #tpu.memory_space<smem>>) -> (i32, i32) {
    %0 = arith.index_cast %arg0 : i32 to index
    %1 = memref.load %arg2[%0] : memref<4xi32, #tpu.memory_space<smem>>
    %c0_i32 = arith.constant 0 : i32
    %c0_i32_0 = arith.constant 0 : i32
    return %1, %c0_i32 : i32, i32
  }
}

</mosaic_0001>

<llo_original>
// kernel: tpu_custom_call.1
$region0: #{tpu_custom_call.1}
  #allocation0 [shape = 'u32[]', space=smem, size = 0x4, offset = 0x4, fixed_abs, tag = 'smem constant byte address 0x4 - core index']
  #allocation1 [shape = 'u32[144,128]{1,0:T(1,128)}', space=vmem, size = 0x12000, scoped, tag = 'internal scratch']
  #allocation2 [shape = 's32[1]{0}', space=sflag, size = 0x4, scoped, tag = 'scoped memory for tpu_custom_call.1']
  #allocation3 [shape = 'u8[512]{0}', space=smem, size = 0x200, scoped, tag = 'prefetched SMEM operand 0']
  #allocation4 [shape = 'u8[512]{0}', space=smem, size = 0x200, scoped, tag = 'prefetched SMEM operand 1']
  %s0 = inlined_call_operand.hbm [shape: s32[4], index: 0, kind: input, shape index: {}]
  %s1 = inlined_call_operand.hbm [shape: s32[4], index: 1, kind: input, shape index: {}]
  %s2 = inlined_call_operand.vmem [shape: bf16[512,128], index: 2, kind: input, shape index: {}]
  %s3 = inlined_call_operand.vmem [shape: bf16[4,128,128], index: 3, kind: input, shape index: {}]
  %s4 = inlined_call_operand.vmem [shape: f32[512,1], index: 4, kind: input, shape index: {}]
  %s5 = inlined_call_operand.vmem [shape: s32[1,512], index: 5, kind: input, shape index: {}]
  %s6 = inlined_call_operand.vmem [shape: f32[1,128], index: 6, kind: input, shape index: {}]
  %s7 = inlined_call_operand.hbm [shape: f32[16,128], index: 7, kind: output, shape index: {}]
  %s8 = sld [smem:[#allocation0]]
  $region57: #{tpu_custom_call.1} parent=0
    _
  %s10 = ssub.s32 1, %s8
  %s11 = scalar_select 0, %s10, %s8
  %13 = dma.hbm_to_smem %s0, 16, [#allocation3], [#allocation2]
  %15 = dma.hbm_to_smem %s1, 16, [#allocation4], [#allocation2]
  %16 = dma.done [#allocation2], 32
  %17 = sfence
  $region1: #{tpu_custom_call.1} parent=0
    #allocation5 [shape = 'u8[16384]{0}', space=vmem, size = 0x4000, scoped, tag = 'output window, operand 0']
    #allocation6 [shape = 's32[2]{0}', space=sflag, size = 0x8, scoped, tag = 'scoped memory for tpu_custom_call.1']
    %18 = vsyncpa [#allocation6], 0
    %s19 = scalar_lea.sflag [#allocation6], 1
    %20 = vsyncpa %s19, 0
    loop: start=0, step=1, limit=6
    $region2: #{tpu_custom_call.1} parent=1 // loop_pre_header
      _
    $region3: #{tpu_custom_call.1} parent=1 // loop_header
      %s22 = sphi 0, %s26
      %p23 = scmp.ge.s32.totalorder %s22, 6
      %s32 = sphi 0, %s34
      %s35 = sphi 0, %s32
      %s36 = sphi 0, %s35
      %s52 = sphi 0, %s36
      %s60 = sphi 0, %s62
      %s63 = sphi 0, %s60
      %s64 = sphi 0, %s63
      %s80 = sphi 0, %s64
      %s86 = sphi 0, %s88
      %s89 = sphi 0, %s86
      %s90 = sphi 0, %s89
      %s106 = sphi 0, %s90
      %s112 = sphi 0, %s114
      %s115 = sphi 0, %s112
      %s116 = sphi 0, %s115
      %s132 = sphi 0, %s116
      %s136 = sphi 0, %s136
      %s138 = sphi 0, %s136
      %s139 = sphi 0, %s138
      %s153 = sphi 0, %s139
      %s161 = sphi 0, %s163
      %s164 = sphi 0, %s161
      %s165 = sphi 0, %s164
      %s181 = sphi 0, %s165
    $region4: #{tpu_custom_call.1} parent=1 // loop_header_branch
      %25 = sbr.rel (%p23) target = $region8
    $region5: #{tpu_custom_call.1} parent=1 // loop_body
      %s27 = ssub.s32 %s22, 1
      %s28 = ssub.s32 %s22, 2
      %s29 = sadd.s32 %s22, 1
      %s30 = ssub.s32 %s22, %s29
      %p31 = scmp.eq.s32.totalorder %s30, 0
      %s33 = sadd.s32 %s32, 1
      %s34 = scalar_select %p31, %s32, %s33
      %p37 = pneg %p31
      %p38 = scmp.eq.s32.totalorder %s22, 3
      %p39 = por %p37, %p38
      %p40 = scmp.ne.s32.totalorder %s32, %s35
      %p41 = scmp.eq.s32.totalorder %s22, 0
      %p42 = por %p40, %p41
      %p43 = scmp.ne.s32.totalorder %s32, %s35
      %p44 = scmp.eq.s32.totalorder %s27, 3
      %p45 = por %p43, %p44
      %p46 = scmp.ne.s32.totalorder %s35, %s36
      %p47 = scmp.eq.s32.totalorder %s27, 0
      %p48 = por %p46, %p47
      %p49 = scmp.ne.s32.totalorder %s35, %s36
      %p50 = scmp.eq.s32.totalorder %s28, 3
      %p51 = por %p49, %p50
      %p53 = scmp.ne.s32.totalorder %s36, %s52
      %p54 = scmp.eq.s32.totalorder %s28, 0
      %p55 = por %p53, %p54
      %s56 = sld [smem:[#allocation3 + %s22]]
      %s57 = sld [smem:[#allocation3 + %s29]]
      %s58 = ssub.s32 %s56, %s57
      %p59 = scmp.eq.s32.totalorder %s58, 0
      %s61 = sadd.s32 %s60, 1
      %s62 = scalar_select %p59, %s60, %s61
      %p65 = pneg %p59
      %p66 = scmp.eq.s32.totalorder %s22, 3
      %p67 = por %p65, %p66
      %p68 = scmp.ne.s32.totalorder %s60, %s63
      %p69 = scmp.eq.s32.totalorder %s22, 0
      %p70 = por %p68, %p69
      %p71 = scmp.ne.s32.totalorder %s60, %s63
      %p72 = scmp.eq.s32.totalorder %s27, 3
      %p73 = por %p71, %p72
      %p74 = scmp.ne.s32.totalorder %s63, %s64
      %p75 = scmp.eq.s32.totalorder %s27, 0
      %p76 = por %p74, %p75
      %p77 = scmp.ne.s32.totalorder %s63, %s64
      %p78 = scmp.eq.s32.totalorder %s28, 3
      %p79 = por %p77, %p78
      %p81 = scmp.ne.s32.totalorder %s64, %s80
      %p82 = scmp.eq.s32.totalorder %s28, 0
      %p83 = por %p81, %p82
      %s84 = ssub.s32 %s22, %s29
      %p85 = scmp.eq.s32.totalorder %s84, 0
      %s87 = sadd.s32 %s86, 1
      %s88 = scalar_select %p85, %s86, %s87
      %p91 = pneg %p85
      %p92 = scmp.eq.s32.totalorder %s22, 3
      %p93 = por %p91, %p92
      %p94 = scmp.ne.s32.totalorder %s86, %s89
      %p95 = scmp.eq.s32.totalorder %s22, 0
      %p96 = por %p94, %p95
      %p97 = scmp.ne.s32.totalorder %s86, %s89
      %p98 = scmp.eq.s32.totalorder %s27, 3
      %p99 = por %p97, %p98
      %p100 = scmp.ne.s32.totalorder %s89, %s90
      %p101 = scmp.eq.s32.totalorder %s27, 0
      %p102 = por %p100, %p101
      %p103 = scmp.ne.s32.totalorder %s89, %s90
      %p104 = scmp.eq.s32.totalorder %s28, 3
      %p105 = por %p103, %p104
      %p107 = scmp.ne.s32.totalorder %s90, %s106
      %p108 = scmp.eq.s32.totalorder %s28, 0
      %p109 = por %p107, %p108
      %s110 = ssub.s32 %s22, %s29
      %p111 = scmp.eq.s32.totalorder %s110, 0
      %s113 = sadd.s32 %s112, 1
      %s114 = scalar_select %p111, %s112, %s113
      %p117 = pneg %p111
      %p118 = scmp.eq.s32.totalorder %s22, 3
      %p119 = por %p117, %p118
      %p120 = scmp.ne.s32.totalorder %s112, %s115
      %p121 = scmp.eq.s32.totalorder %s22, 0
      %p122 = por %p120, %p121
      %p123 = scmp.ne.s32.totalorder %s112, %s115
      %p124 = scmp.eq.s32.totalorder %s27, 3
      %p125 = por %p123, %p124
      %p126 = scmp.ne.s32.totalorder %s115, %s116
      %p127 = scmp.eq.s32.totalorder %s27, 0
      %p128 = por %p126, %p127
      %p129 = scmp.ne.s32.totalorder %s115, %s116
      %p130 = scmp.eq.s32.totalorder %s28, 3
      %p131 = por %p129, %p130
      %p133 = scmp.ne.s32.totalorder %s116, %s132
      %p134 = scmp.eq.s32.totalorder %s28, 0
      %p135 = por %p133, %p134
      %s137 = sadd.s32 %s136, 1
      %p140 = scmp.eq.s32.totalorder %s22, 3
      %p141 = scmp.ne.s32.totalorder %s136, %s138
      %p142 = scmp.eq.s32.totalorder %s22, 0
      %p143 = por %p141, %p142
      %p144 = scmp.ne.s32.totalorder %s136, %s138
      %p145 = scmp.eq.s32.totalorder %s27, 3
      %p146 = por %p144, %p145
      %p147 = scmp.ne.s32.totalorder %s138, %s139
      %p148 = scmp.eq.s32.totalorder %s27, 0
      %p149 = por %p147, %p148
      %p150 = scmp.ne.s32.totalorder %s138, %s139
      %p151 = scmp.eq.s32.totalorder %s28, 3
      %p152 = por %p150, %p151
      %p154 = scmp.ne.s32.totalorder %s139, %s153
      %p155 = scmp.eq.s32.totalorder %s28, 0
      %p156 = por %p154, %p155
      %s157 = sld [smem:[#allocation4 + %s22]]
      %s158 = sld [smem:[#allocation4 + %s29]]
      %s159 = ssub.s32 %s157, %s158
      %p160 = scmp.eq.s32.totalorder %s159, 0
      %s162 = sadd.s32 %s161, 1
      %s163 = scalar_select %p160, %s161, %s162
      %p166 = pneg %p160
      %p167 = scmp.eq.s32.totalorder %s22, 3
      %p168 = por %p166, %p167
      %p169 = scmp.ne.s32.totalorder %s161, %s164
      %p170 = scmp.eq.s32.totalorder %s22, 0
      %p171 = por %p169, %p170
      %p172 = scmp.ne.s32.totalorder %s161, %s164
      %p173 = scmp.eq.s32.totalorder %s27, 3
      %p174 = por %p172, %p173
      %p175 = scmp.ne.s32.totalorder %s164, %s165
      %p176 = scmp.eq.s32.totalorder %s27, 0
      %p177 = por %p175, %p176
      %p178 = scmp.ne.s32.totalorder %s164, %s165
      %p179 = scmp.eq.s32.totalorder %s28, 3
      %p180 = por %p178, %p179
      %p182 = scmp.ne.s32.totalorder %s165, %s181
      %p183 = scmp.eq.s32.totalorder %s28, 0
      %p184 = por %p182, %p183
      %p185 = scmp.le.s32.totalorder 1, %s22
      %p186 = scmp.lt.s32.totalorder %s22, 5
      %p187 = pnand %p185, %p186
      %p188 = pneg %p187
      // Predicated region
      $region9: #{tpu_custom_call.1} parent=5 // pred_check
        _
      $region10: #{tpu_custom_call.1} parent=5 // pred_check_branch
        %190 = sbr.rel (%p187) target = $region12
      $region11: #{tpu_custom_call.1} parent=5 // pred_region
        %s191 = ssub.s32 %s22, 1
        // Predicated region
        $region13: #{tpu_custom_call.1} parent=11 // pred_check
          %p192 = pneg %p149
        $region14: #{tpu_custom_call.1} parent=11 // pred_check_branch
          %194 = sbr.rel (%p192) target = $region16
        $region15: #{tpu_custom_call.1} parent=11 // pred_region
          _
        $region16: #{tpu_custom_call.1} parent=11 // pred_fallthru
          _
      $region12: #{tpu_custom_call.1} parent=5 // pred_fallthru
        _
      %p195 = scmp.lt.s32.totalorder %s22, 4
      // Predicated region
      $region17: #{tpu_custom_call.1} parent=5 // pred_check
        %p196 = pneg %p195
      $region18: #{tpu_custom_call.1} parent=5 // pred_check_branch
        %198 = sbr.rel (%p196) target = $region20
      $region19: #{tpu_custom_call.1} parent=5 // pred_region
        // Predicated region
        $region21: #{tpu_custom_call.1} parent=19 // pred_check
          %p199 = pneg %p42
        $region22: #{tpu_custom_call.1} parent=19 // pred_check_branch
          %201 = sbr.rel (%p199) target = $region24
        $region23: #{tpu_custom_call.1} parent=19 // pred_region
          %s202 = smul.u32 16, %s22
          %p203 = scmp.lt.s32.totalorder %s202, 63
          %s204 = scalar_select %p203, %s202, 63
          %s205 = smul.addr %s204, 4
          %s206 = scalar_lea.vmem %s2, %s205
          %s207 = smul.u32 16, %s22
        $region24: #{tpu_custom_call.1} parent=19 // pred_fallthru
          _
        // Predicated region
        $region25: #{tpu_custom_call.1} parent=19 // pred_check
          %p208 = pneg %p70
        $region26: #{tpu_custom_call.1} parent=19 // pred_check_branch
          %210 = sbr.rel (%p208) target = $region28
        $region27: #{tpu_custom_call.1} parent=19 // pred_region
          %s211 = sld [smem:[#allocation3 + %s22]]
          %p212 = scmp.lt.s32.totalorder %s211, 3
          %s213 = scalar_select %p212, %s211, 3
          %s214 = smul.addr %s213, 16
          %s215 = smul.addr %s214, 4
          %s216 = scalar_lea.vmem %s3, %s215
          %s217 = sld [smem:[#allocation3 + %s22]]
        $region28: #{tpu_custom_call.1} parent=19 // pred_fallthru
          _
        // Predicated region
        $region29: #{tpu_custom_call.1} parent=19 // pred_check
          %p218 = pneg %p96
        $region30: #{tpu_custom_call.1} parent=19 // pred_check_branch
          %220 = sbr.rel (%p218) target = $region32
        $region31: #{tpu_custom_call.1} parent=19 // pred_region
          %s221 = smul.u32 16, %s22
          %p222 = scmp.lt.s32.totalorder %s221, 63
          %s223 = scalar_select %p222, %s221, 63
          %s224 = smul.addr %s223, 8
          %s225 = scalar_lea.vmem %s4, %s224
          %s226 = smul.u32 16, %s22
        $region32: #{tpu_custom_call.1} parent=19 // pred_fallthru
          _
        // Predicated region
        $region33: #{tpu_custom_call.1} parent=19 // pred_check
          %p227 = pneg %p122
        $region34: #{tpu_custom_call.1} parent=19 // pred_check_branch
          %229 = sbr.rel (%p227) target = $region36
        $region35: #{tpu_custom_call.1} parent=19 // pred_region
          %p230 = scmp.lt.s32.totalorder %s22, 3
          %s231 = scalar_select %p230, %s22, 3
          %s232 = scalar_lea.vmem %s5, %s231
        $region36: #{tpu_custom_call.1} parent=19 // pred_fallthru
          _
      $region20: #{tpu_custom_call.1} parent=5 // pred_fallthru
        _
      %p233 = scmp.le.s32.totalorder 1, %s22
      %p234 = scmp.lt.s32.totalorder %s22, 5
      %p235 = pnand %p233, %p234
      %p236 = pneg %p235
      // Predicated region
      $region37: #{tpu_custom_call.1} parent=5 // pred_check
        _
      $region38: #{tpu_custom_call.1} parent=5 // pred_check_branch
        %238 = sbr.rel (%p235) target = $region40
      $region39: #{tpu_custom_call.1} parent=5 // pred_region
        %s239 = ssub.s32 %s22, 1
        %s240 = smul.u32 16, %s27
        %p241 = scmp.lt.s32.totalorder %s240, 63
        %s242 = scalar_select %p241, %s240, 63
        %s243 = smul.addr %s242, 4
        %s244 = scalar_lea.vmem %s2, %s243
        %p245 = pneg %p48
        %p246 = pneg %p45
        %s247 = sld [smem:[#allocation3 + %s27]]
        %p248 = scmp.lt.s32.totalorder %s247, 3
        %s249 = scalar_select %p248, %s247, 3
        %s250 = smul.addr %s249, 16
        %s251 = smul.addr %s250, 4
        %s252 = scalar_lea.vmem %s3, %s251
        %p253 = pneg %p76
        %p254 = pneg %p73
        %s255 = smul.u32 16, %s27
        %p256 = scmp.lt.s32.totalorder %s255, 63
        %s257 = scalar_select %p256, %s255, 63
        %s258 = smul.addr %s257, 8
        %s259 = scalar_lea.vmem %s4, %s258
        %p260 = pneg %p102
        %p261 = pneg %p99
        %p262 = scmp.lt.s32.totalorder %s27, 3
        %s263 = scalar_select %p262, %s27, 3
        %s264 = scalar_lea.vmem %s5, %s263
        %p265 = pneg %p128
        %p266 = pneg %p125
        %p267 = pneg %p149
        %p268 = pneg %p146
        %p269 = pneg %p177
        %p270 = pneg %p174
        %s271 = sand.u32 %s164, 1
        %s272 = scalar_lea.sflag [#allocation6], %s271
        %s273 = sand.u32 %s164, 1
        %s274 = smul.addr %s273, 16
        %s275 = scalar_lea.vmem [#allocation5], %s274
        %s276 = smul.u32 16, %s27
        %p277 = scmp.lt.s32.totalorder %s276, 63
        %s278 = scalar_select %p277, %s276, 63
        %s279 = smul.addr %s278, 4
        %s280 = scalar_lea.vmem %s2, %s279
        %s281 = smul.u32 16, %s27
        %s282 = sld [smem:[#allocation3 + %s27]]
        %p283 = scmp.lt.s32.totalorder %s282, 3
        %s284 = scalar_select %p283, %s282, 3
        %s285 = smul.addr %s284, 16
        %s286 = smul.addr %s285, 4
        %s287 = scalar_lea.vmem %s3, %s286
        %s288 = sld [smem:[#allocation3 + %s27]]
        %s289 = smul.u32 16, %s27
        %p290 = scmp.lt.s32.totalorder %s289, 63
        %s291 = scalar_select %p290, %s289, 63
        %s292 = smul.addr %s291, 8
        %s293 = scalar_lea.vmem %s4, %s292
        %s294 = smul.u32 16, %s27
        %p295 = scmp.lt.s32.totalorder %s27, 3
        %s296 = scalar_select %p295, %s27, 3
        %s297 = scalar_lea.vmem %s5, %s296
        %s298 = sld [smem:[#allocation4 + %s27]]
        %s299 = smul.u32 2, %s298
        %s301 = sld [smem:[#allocation4 + %s27]]
        %s302 = ssub.s32 %s27, 1
        %p303 = scmp.gt.s32.totalorder %s302, 0
        %s304 = scalar_select %p303, %s302, 0
        %s305 = sld [smem:[#allocation4 + %s304]]
        %p306 = scmp.eq.s32.totalorder %s27, 0
        %p307 = scmp.ne.s32.totalorder %s301, %s305
        %p308 = por %p306, %p307
        // Predicated region
        $region41: #{tpu_custom_call.1} parent=39 // pred_check
          %p309 = pneg %p308
        $region42: #{tpu_custom_call.1} parent=39 // pred_check_branch
          %311 = sbr.rel (%p309) target = $region44
        $region43: #{tpu_custom_call.1} parent=39 // pred_region
          %v312 = vld [vmem:[%s6] sm:$0x1]
          %v314 = vlaneseq
          %v315 = vshrl.u32 %v314, 7
          %v316 = vsub.s32 0, %v315
          %v317 = vrot.slane %v312, %v316
          %319 = vst [vmem:[%s275] sm:$0xff] %v317
          %320 = vst [vmem:[%s275 + $0x8] sm:$0xff] %v317
        $region44: #{tpu_custom_call.1} parent=39 // pred_fallthru
          _
        %v321 = vld [vmem:[%s280] sm:$0xf]
        %v322 = vld [vmem:[%s280 + $0x4] sm:$0xf]
        %v323 = vld [vmem:[%s280 + $0x8] sm:$0xf]
        %v324 = vld [vmem:[%s280 + $0xc] sm:$0xf]
        %v325 = vld [vmem:[%s280 + $0x10] sm:$0xf]
        %v326 = vld [vmem:[%s280 + $0x14] sm:$0xf]
        %v327 = vld [vmem:[%s280 + $0x18] sm:$0xf]
        %v328 = vld [vmem:[%s280 + $0x1c] sm:$0xf]
        %v329 = vld [vmem:[%s280 + $0x20] sm:$0xf]
        %v330 = vld [vmem:[%s280 + $0x24] sm:$0xf]
        %v331 = vld [vmem:[%s280 + $0x28] sm:$0xf]
        %v332 = vld [vmem:[%s280 + $0x2c] sm:$0xf]
        %v333 = vld [vmem:[%s280 + $0x30] sm:$0xf]
        %v334 = vld [vmem:[%s280 + $0x34] sm:$0xf]
        %v335 = vld [vmem:[%s280 + $0x38] sm:$0xf]
        %v336 = vld [vmem:[%s280 + $0x3c] sm:$0xf]
        %v337 = vld [vmem:[%s287] sm:$0xf]
        %v338 = vld [vmem:[%s287 + $0x4] sm:$0xf]
        %v339 = vld [vmem:[%s287 + $0x8] sm:$0xf]
        %v340 = vld [vmem:[%s287 + $0xc] sm:$0xf]
        %v341 = vld [vmem:[%s287 + $0x10] sm:$0xf]
        %v342 = vld [vmem:[%s287 + $0x14] sm:$0xf]
        %v343 = vld [vmem:[%s287 + $0x18] sm:$0xf]
        %v344 = vld [vmem:[%s287 + $0x1c] sm:$0xf]
        %v345 = vld [vmem:[%s287 + $0x20] sm:$0xf]
        %v346 = vld [vmem:[%s287 + $0x24] sm:$0xf]
        %v347 = vld [vmem:[%s287 + $0x28] sm:$0xf]
        %v348 = vld [vmem:[%s287 + $0x2c] sm:$0xf]
        %v349 = vld [vmem:[%s287 + $0x30] sm:$0xf]
        %v350 = vld [vmem:[%s287 + $0x34] sm:$0xf]
        %v351 = vld [vmem:[%s287 + $0x38] sm:$0xf]
        %v352 = vld [vmem:[%s287 + $0x3c] sm:$0xf]
        %v369 = vunpack.c.l.b16 %v321
        %v370 = vunpack.c.l.b16 %v322
        %v371 = vunpack.c.l.b16 %v323
        %v372 = vunpack.c.l.b16 %v324
        %v373 = vunpack.c.l.b16 %v325
        %v374 = vunpack.c.l.b16 %v326
        %v375 = vunpack.c.l.b16 %v327
        %v376 = vunpack.c.l.b16 %v328
        %v377 = vunpack.c.l.b16 %v329
        %v378 = vunpack.c.l.b16 %v330
        %v379 = vunpack.c.l.b16 %v331
        %v380 = vunpack.c.l.b16 %v332
        %v381 = vunpack.c.l.b16 %v333
        %v382 = vunpack.c.l.b16 %v334
        %v383 = vunpack.c.l.b16 %v335
        %v384 = vunpack.c.l.b16 %v336
        %v385 = vpack.c.b16 %v370, %v369
        %v386 = vpack.c.b16 %v372, %v371
        %v387 = vpack.c.b16 %v374, %v373
        %v388 = vpack.c.b16 %v376, %v375
        %v389 = vpack.c.b16 %v378, %v377
        %v390 = vpack.c.b16 %v380, %v379
        %v391 = vpack.c.b16 %v382, %v381
        %v392 = vpack.c.b16 %v384, %v383
        %v417 = vunpack.c.l.b16 %v337
        %v418 = vunpack.c.l.b16 %v338
        %v419 = vunpack.c.l.b16 %v339
        %v420 = vunpack.c.l.b16 %v340
        %v421 = vunpack.c.l.b16 %v341
        %v422 = vunpack.c.l.b16 %v342
        %v423 = vunpack.c.l.b16 %v343
        %v424 = vunpack.c.l.b16 %v344
        %v425 = vunpack.c.l.b16 %v345
        %v426 = vunpack.c.l.b16 %v346
        %v427 = vunpack.c.l.b16 %v347
        %v428 = vunpack.c.l.b16 %v348
        %v429 = vunpack.c.l.b16 %v349
        %v430 = vunpack.c.l.b16 %v350
        %v431 = vunpack.c.l.b16 %v351
        %v432 = vunpack.c.l.b16 %v352
        %v433 = vpack.c.b16 %v418, %v417
        %v434 = vpack.c.b16 %v420, %v419
        %v435 = vpack.c.b16 %v422, %v421
        %v436 = vpack.c.b16 %v424, %v423
        %v437 = vpack.c.b16 %v426, %v425
        %v438 = vpack.c.b16 %v428, %v427
        %v439 = vpack.c.b16 %v430, %v429
        %v440 = vpack.c.b16 %v432, %v431
        %449 = vmatprep.subr.bf16.mxu0 0
        %450 = vmatpush1.bf16.msra.mxu0 %v440
        %451 = vmatprep.subr.bf16.mxu0 0
        %452 = vmatpush1.bf16.msra.mxu0 %v439
        %453 = vmatprep.subr.bf16.mxu0 0
        %454 = vmatpush1.bf16.msra.mxu0 %v438
        %455 = vmatprep.subr.bf16.mxu0 0
        %456 = vmatpush1.bf16.msra.mxu0 %v437
        %457 = vmatprep.subr.bf16.mxu0 0
        %458 = vmatpush1.bf16.msra.mxu0 %v436
        %459 = vmatprep.subr.bf16.mxu0 0
        %460 = vmatpush1.bf16.msra.mxu0 %v435
        %461 = vmatprep.subr.bf16.mxu0 0
        %462 = vmatpush1.bf16.msra.mxu0 %v434
        %463 = vmatprep.subr.bf16.mxu0 0
        %464 = vmatpush1.bf16.msra.mxu0 %v433
        %465 = vmatprep.subr.bf16.mxu0 0
        %466 = vmatpush2.bf16.msra.mxu0 0
        %467 = vmatprep.subr.bf16.mxu0 0
        %468 = vmatpush2.bf16.msra.mxu0 0
        %469 = vmatprep.subr.bf16.mxu0 0
        %470 = vmatpush2.bf16.msra.mxu0 0
        %471 = vmatprep.subr.bf16.mxu0 0
        %472 = vmatpush2.bf16.msra.mxu0 0
        %473 = vmatprep.subr.bf16.mxu0 0
        %474 = vmatpush2.bf16.msra.mxu0 0
        %475 = vmatprep.subr.bf16.mxu0 0
        %476 = vmatpush2.bf16.msra.mxu0 0
        %477 = vmatprep.subr.bf16.mxu0 0
        %478 = vmatpush2.bf16.msra.mxu0 0
        %479 = vmatprep.subr.bf16.mxu0 0
        %480 = vmatpush2.bf16.msra.mxu0 0
        %481 = vmatprep.mubr.bf16.mxu0 0
        %482 = vmatmul.mubr.bf16.gmra.mxu0 %v385
        %v483 = vpop.f32.mrf.mxu0
        %v484 = vadd.f32 0.0, %v483
        %v485 = vpop.f32.mrf.mxu0
        %v486 = vpop.f32.mrf.mxu0
        %v487 = vadd.f32 0.0, %v486
        %v488 = vpop.f32.mrf.mxu0
        %489 = vmatprep.mubr.bf16.mxu0 0
        %490 = vmatmul.mubr.bf16.gmra.mxu0 %v386
        %v491 = vpop.f32.mrf.mxu0
        %v492 = vadd.f32 0.0, %v491
        %v493 = vpop.f32.mrf.mxu0
        %v494 = vpop.f32.mrf.mxu0
        %v495 = vadd.f32 0.0, %v494
        %v496 = vpop.f32.mrf.mxu0
        %497 = vmatprep.mubr.bf16.mxu0 0
        %498 = vmatmul.mubr.bf16.gmra.mxu0 %v387
        %v499 = vpop.f32.mrf.mxu0
        %v500 = vadd.f32 0.0, %v499
        %v501 = vpop.f32.mrf.mxu0
        %v502 = vpop.f32.mrf.mxu0
        %v503 = vadd.f32 0.0, %v502
        %v504 = vpop.f32.mrf.mxu0
        %505 = vmatprep.mubr.bf16.mxu0 0
        %506 = vmatmul.mubr.bf16.gmra.mxu0 %v388
        %v507 = vpop.f32.mrf.mxu0
        %v508 = vadd.f32 0.0, %v507
        %v509 = vpop.f32.mrf.mxu0
        %v510 = vpop.f32.mrf.mxu0
        %v511 = vadd.f32 0.0, %v510
        %v512 = vpop.f32.mrf.mxu0
        %513 = vmatprep.mubr.bf16.mxu0 0
        %514 = vmatmul.mubr.bf16.gmra.mxu0 %v389
        %v515 = vpop.f32.mrf.mxu0
        %v516 = vadd.f32 0.0, %v515
        %v517 = vpop.f32.mrf.mxu0
        %v518 = vpop.f32.mrf.mxu0
        %v519 = vadd.f32 0.0, %v518
        %v520 = vpop.f32.mrf.mxu0
        %521 = vmatprep.mubr.bf16.mxu0 0
        %522 = vmatmul.mubr.bf16.gmra.mxu0 %v390
        %v523 = vpop.f32.mrf.mxu0
        %v524 = vadd.f32 0.0, %v523
        %v525 = vpop.f32.mrf.mxu0
        %v526 = vpop.f32.mrf.mxu0
        %v527 = vadd.f32 0.0, %v526
        %v528 = vpop.f32.mrf.mxu0
        %529 = vmatprep.mubr.bf16.mxu0 0
        %530 = vmatmul.mubr.bf16.gmra.mxu0 %v391
        %v531 = vpop.f32.mrf.mxu0
        %v532 = vadd.f32 0.0, %v531
        %v533 = vpop.f32.mrf.mxu0
        %v534 = vpop.f32.mrf.mxu0
        %v535 = vadd.f32 0.0, %v534
        %v536 = vpop.f32.mrf.mxu0
        %537 = vmatprep.mubr.bf16.mxu0 0
        %538 = vmatmul.mubr.bf16.gmra.mxu0 %v392
        %v539 = vpop.f32.mrf.mxu0
        %v540 = vadd.f32 0.0, %v539
        %v541 = vpop.f32.mrf.mxu0
        %v542 = vpop.f32.mrf.mxu0
        %v543 = vadd.f32 0.0, %v542
        %v544 = vpop.f32.mrf.mxu0
        %545 = vdwg.mxu0
        %v546 = vld [vmem:[%s293] sm:$0xff]
        %v547 = vld [vmem:[%s293 + $0x8] sm:$0xff]
        %v548 = vld [vmem:[%s293 + $0x10] sm:$0xff]
        %v549 = vld [vmem:[%s293 + $0x18] sm:$0xff]
        %v550 = vld [vmem:[%s293 + $0x20] sm:$0xff]
        %v551 = vld [vmem:[%s293 + $0x28] sm:$0xff]
        %v552 = vld [vmem:[%s293 + $0x30] sm:$0xff]
        %v553 = vld [vmem:[%s293 + $0x38] sm:$0xff]
        %v554 = vld [vmem:[%s293 + $0x40] sm:$0xff]
        %v555 = vld [vmem:[%s293 + $0x48] sm:$0xff]
        %v556 = vld [vmem:[%s293 + $0x50] sm:$0xff]
        %v557 = vld [vmem:[%s293 + $0x58] sm:$0xff]
        %v558 = vld [vmem:[%s293 + $0x60] sm:$0xff]
        %v559 = vld [vmem:[%s293 + $0x68] sm:$0xff]
        %v560 = vld [vmem:[%s293 + $0x70] sm:$0xff]
        %v561 = vld [vmem:[%s293 + $0x78] sm:$0xff]
        %563 = vset.pattern.permute.xlu0 0
        %564 = vperm.xlu0 %563, %v546
        %v565 = vpop.permute.xlu0 %564
        %568 = vset.pattern.permute.xlu0 0
        %569 = vperm.xlu0 %568, %v547
        %v570 = vpop.permute.xlu0 %569
        %573 = vset.pattern.permute.xlu0 0
        %574 = vperm.xlu0 %573, %v548
        %v575 = vpop.permute.xlu0 %574
        %578 = vset.pattern.permute.xlu0 0
        %579 = vperm.xlu0 %578, %v549
        %v580 = vpop.permute.xlu0 %579
        %583 = vset.pattern.permute.xlu0 0
        %584 = vperm.xlu0 %583, %v550
        %v585 = vpop.permute.xlu0 %584
        %588 = vset.pattern.permute.xlu0 0
        %589 = vperm.xlu0 %588, %v551
        %v590 = vpop.permute.xlu0 %589
        %593 = vset.pattern.permute.xlu0 0
        %594 = vperm.xlu0 %593, %v552
        %v595 = vpop.permute.xlu0 %594
        %598 = vset.pattern.permute.xlu0 0
        %599 = vperm.xlu0 %598, %v553
        %v600 = vpop.permute.xlu0 %599
        %603 = vset.pattern.permute.xlu0 0
        %604 = vperm.xlu0 %603, %v554
        %v605 = vpop.permute.xlu0 %604
        %608 = vset.pattern.permute.xlu0 0
        %609 = vperm.xlu0 %608, %v555
        %v610 = vpop.permute.xlu0 %609
        %613 = vset.pattern.permute.xlu0 0
        %614 = vperm.xlu0 %613, %v556
        %v615 = vpop.permute.xlu0 %614
        %618 = vset.pattern.permute.xlu0 0
        %619 = vperm.xlu0 %618, %v557
        %v620 = vpop.permute.xlu0 %619
        %623 = vset.pattern.permute.xlu0 0
        %624 = vperm.xlu0 %623, %v558
        %v625 = vpop.permute.xlu0 %624
        %628 = vset.pattern.permute.xlu0 0
        %629 = vperm.xlu0 %628, %v559
        %v630 = vpop.permute.xlu0 %629
        %633 = vset.pattern.permute.xlu0 0
        %634 = vperm.xlu0 %633, %v560
        %v635 = vpop.permute.xlu0 %634
        %638 = vset.pattern.permute.xlu0 0
        %639 = vperm.xlu0 %638, %v561
        %v640 = vpop.permute.xlu0 %639
        %v642 = vmul.f32 %v484, %v565
        %v643 = vmul.f32 %v487, %v570
        %v644 = vmul.f32 %v492, %v575
        %v645 = vmul.f32 %v495, %v580
        %v646 = vmul.f32 %v500, %v585
        %v647 = vmul.f32 %v503, %v590
        %v648 = vmul.f32 %v508, %v595
        %v649 = vmul.f32 %v511, %v600
        %v650 = vmul.f32 %v516, %v605
        %v651 = vmul.f32 %v519, %v610
        %v652 = vmul.f32 %v524, %v615
        %v653 = vmul.f32 %v527, %v620
        %v654 = vmul.f32 %v532, %v625
        %v655 = vmul.f32 %v535, %v630
        %v656 = vmul.f32 %v540, %v635
        %v657 = vmul.f32 %v543, %v640
        %v658 = vld [vmem:[%s297] sm:$0x1]
        %s659 = smul.u32 %s301, 16
        %v660 = vstv %s659
        %v661 = vsub.s32 %v658, %v660
        %v662 = vlaneseq
        %v663 = vshrl.u32 %v662, 7
        %v664 = vadd.s32 %v663, 8
        %v665 = vlaneseq
        %v666 = vshrl.u32 %v665, 7
        %v667 = vsub.s32 0, %v666
        %v668 = vrot.slane %v661, %v667
        %vm669 = vcmp.eq.s32.totalorder %v663, %v668
        %vm670 = vcmp.eq.s32.totalorder %v664, %v668
        %v671 = vsel %vm669, 1, 0
        %v672 = vsel %vm670, 1, 0
        %v673 = vcvt.s32.f32 %v671
        %v674 = vcvt.s32.f32 %v672
        %v675 = vld [vmem:[%s275] sm:$0xff]
        %v676 = vld [vmem:[%s275 + $0x8] sm:$0xff]
        %677 = vmatprep.subr.mxu0 0.0
        %678 = vmatpush1.msra.mxu0 %v657
        %679 = vmatprep.subr.mxu0 0.0
        %680 = vmatpush1.msra.mxu0 %v656
        %681 = vmatprep.subr.mxu0 0.0
        %682 = vmatpush1.msra.mxu0 %v655
        %683 = vmatprep.subr.mxu0 0.0
        %684 = vmatpush1.msra.mxu0 %v654
        %685 = vmatprep.subr.mxu0 0.0
        %686 = vmatpush1.msra.mxu0 %v653
        %687 = vmatprep.subr.mxu0 0.0
        %688 = vmatpush1.msra.mxu0 %v652
        %689 = vmatprep.subr.mxu0 0.0
        %690 = vmatpush1.msra.mxu0 %v651
        %691 = vmatprep.subr.mxu0 0.0
        %692 = vmatpush1.msra.mxu0 %v650
        %693 = vmatprep.subr.mxu0 0.0
        %694 = vmatpush1.msra.mxu0 %v649
        %695 = vmatprep.subr.mxu0 0.0
        %696 = vmatpush1.msra.mxu0 %v648
        %697 = vmatprep.subr.mxu0 0.0
        %698 = vmatpush1.msra.mxu0 %v647
        %699 = vmatprep.subr.mxu0 0.0
        %700 = vmatpush1.msra.mxu0 %v646
        %701 = vmatprep.subr.mxu0 0.0
        %702 = vmatpush1.msra.mxu0 %v645
        %703 = vmatprep.subr.mxu0 0.0
        %704 = vmatpush1.msra.mxu0 %v644
        %705 = vmatprep.subr.mxu0 0.0
        %706 = vmatpush1.msra.mxu0 %v643
        %707 = vmatprep.subr.mxu0 0.0
        %708 = vmatpush1.msra.mxu0 %v642
        %709 = vmatprep.subr.mxu0 0.0
        %710 = vmatpush2.msra.mxu0 0.0
        %711 = vmatprep.subr.mxu0 0.0
        %712 = vmatpush2.msra.mxu0 0.0
        %713 = vmatprep.subr.mxu0 0.0
        %714 = vmatpush2.msra.mxu0 0.0
        %715 = vmatprep.subr.mxu0 0.0
        %716 = vmatpush2.msra.mxu0 0.0
        %717 = vmatprep.subr.mxu0 0.0
        %718 = vmatpush2.msra.mxu0 0.0
        %719 = vmatprep.subr.mxu0 0.0
        %720 = vmatpush2.msra.mxu0 0.0
        %721 = vmatprep.subr.mxu0 0.0
        %722 = vmatpush2.msra.mxu0 0.0
        %723 = vmatprep.subr.mxu0 0.0
        %724 = vmatpush2.msra.mxu0 0.0
        %725 = vmatprep.subr.mxu0 0.0
        %726 = vmatpush2.msra.mxu0 0.0
        %727 = vmatprep.subr.mxu0 0.0
        %728 = vmatpush2.msra.mxu0 0.0
        %729 = vmatprep.subr.mxu0 0.0
        %730 = vmatpush2.msra.mxu0 0.0
        %731 = vmatprep.subr.mxu0 0.0
        %732 = vmatpush2.msra.mxu0 0.0
        %733 = vmatprep.subr.mxu0 0.0
        %734 = vmatpush2.msra.mxu0 0.0
        %735 = vmatprep.subr.mxu0 0.0
        %736 = vmatpush2.msra.mxu0 0.0
        %737 = vmatprep.subr.mxu0 0.0
        %738 = vmatpush2.msra.mxu0 0.0
        %739 = vmatprep.subr.mxu0 0.0
        %740 = vmatpush2.msra.mxu0 0.0
        %741 = vmatprep.mubr.f32.mxu0 0.0
        %742 = vmatmul.mubr.f32.gmra.mxu0 %v673
        %v743 = vpop.f32.mrf.mxu0
        %v744 = vadd.f32 0.0, %v743
        %v745 = vpop.f32.mrf.mxu0
        %746 = vmatprep.mubr.f32.mxu0 0.0
        %747 = vmatmul.mubr.f32.gmra.mxu0 %v674
        %v748 = vpop.f32.mrf.mxu0
        %v749 = vadd.f32 0.0, %v748
        %v750 = vpop.f32.mrf.mxu0
        %751 = vdwg.mxu0
        %v752 = vadd.f32 %v675, %v744
        %v753 = vadd.f32 %v676, %v749
        %754 = vst [vmem:[%s275] sm:$0xff] %v752
        %755 = vst [vmem:[%s275 + $0x8] sm:$0xff] %v753
        %s756 = sand.u32 %s164, 1
        %s757 = scalar_lea.sflag [#allocation6], %s756
        %s758 = sand.u32 %s164, 1
        %s759 = smul.addr %s758, 16
        %s760 = scalar_lea.vmem [#allocation5], %s759
        // Predicated region
        $region45: #{tpu_custom_call.1} parent=39 // pred_check
          %p761 = pneg %p174
        $region46: #{tpu_custom_call.1} parent=39 // pred_check_branch
          %763 = sbr.rel (%p761) target = $region48
        $region47: #{tpu_custom_call.1} parent=39 // pred_region
          %s764 = sld [smem:[#allocation4 + %s27]]
          %s765 = smul.u32 2, %s764
          %s767 = ssub.s32 256, 256
          %768 = vsyncadd %s757, %s767
          %s769 = smul.addr %s765, 128
          %s770 = scalar_lea.hbm %s7, %s769
          %s771 = sshll.u32 %s760, 4
          %s772 = int_to_ptr.vmem [resolvable:$true] %s771
          %777 = dma.vmem_to_hbm [thread:$0]  %s772, 256, %s770, %s757, 128, 128, 8
        $region48: #{tpu_custom_call.1} parent=39 // pred_fallthru
          _
      $region40: #{tpu_custom_call.1} parent=5 // pred_fallthru
        _
      %p778 = scmp.le.s32.totalorder 2, %s22
      // Predicated region
      $region49: #{tpu_custom_call.1} parent=5 // pred_check
        %p779 = pneg %p778
      $region50: #{tpu_custom_call.1} parent=5 // pred_check_branch
        %781 = sbr.rel (%p779) target = $region52
      $region51: #{tpu_custom_call.1} parent=5 // pred_region
        %s782 = ssub.s32 %s22, 2
        // Predicated region
        $region53: #{tpu_custom_call.1} parent=51 // pred_check
          %p783 = pneg %p180
        $region54: #{tpu_custom_call.1} parent=51 // pred_check_branch
          %785 = sbr.rel (%p783) target = $region56
        $region55: #{tpu_custom_call.1} parent=51 // pred_region
          %s786 = sand.u32 %s165, 1
          %s787 = scalar_lea.sflag [#allocation6], %s786
          %s788 = sand.u32 %s165, 1
          %s789 = smul.addr %s788, 16
          %s790 = scalar_lea.vmem [#allocation5], %s789
          %791 = dma.done %s787, 256
        $region56: #{tpu_custom_call.1} parent=51 // pred_fallthru
          _
      $region52: #{tpu_custom_call.1} parent=5 // pred_fallthru
        _
    $region6: #{tpu_custom_call.1} parent=1 // loop_footer
      %s26 = sadd.s32 1, %s22
    $region7: #{tpu_custom_call.1} parent=1 // loop_footer_branch
      %21 = sbr.rel target = $region3
    $region8: #{tpu_custom_call.1} parent=1 // loop_exit
      _
    %792 = vsyncpa [#allocation6], 1
    %s793 = scalar_lea.sflag [#allocation6], 1
    %794 = vsyncpa %s793, 1

</llo_original>
